<compile_context>
chip_gen: v7x
topology: tpu7x:2x2x1
jax: 0.10.0
libtpu: 0.0.40
codegen_flags: <defaults>
</compile_context>

<pallas_src>
import functools

import jax
import jax.numpy as jnp
from jax import lax
from jax.experimental import pallas as pl
from jax.experimental.pallas import tpu as pltpu


def _cdiv(a: int, b: int) -> int:
    return (a + b - 1) // b


def _round_up(a: int, b: int) -> int:
    return _cdiv(a, b) * b


# -----------------------------------------------------------------------------
# Kernels: acc[i,j] = sum_k x[i,k] * W[j,k]   (+ bias[j] at K-finalize)
# -----------------------------------------------------------------------------
def _matmul_kernel(x_ref, w_ref, o_ref, acc_ref):
    kk = pl.program_id(2)
    part = lax.dot_general(
        x_ref[...], w_ref[...],
        dimension_numbers=(((1,), (1,)), ((), ())),   # contract K of both
        preferred_element_type=jnp.float32,
    )

    @pl.when(kk == 0)
    def _():
        acc_ref[...] = part                 # direct assign: no zero-init pass

    @pl.when(kk != 0)
    def _():
        acc_ref[...] = acc_ref[...] + part

    @pl.when(kk == pl.num_programs(2) - 1)
    def _():
        o_ref[...] = acc_ref[...].astype(o_ref.dtype)


def _matmul_bias_kernel(x_ref, w_ref, b_ref, o_ref, acc_ref):
    kk = pl.program_id(2)
    part = lax.dot_general(
        x_ref[...], w_ref[...],
        dimension_numbers=(((1,), (1,)), ((), ())),
        preferred_element_type=jnp.float32,
    )

    @pl.when(kk == 0)
    def _():
        acc_ref[...] = part

    @pl.when(kk != 0)
    def _():
        acc_ref[...] = acc_ref[...] + part

    @pl.when(kk == pl.num_programs(2) - 1)
    def _():
        o_ref[...] = (acc_ref[...] + b_ref[...].astype(jnp.float32)).astype(o_ref.dtype)


# -----------------------------------------------------------------------------
# Wrapper
# -----------------------------------------------------------------------------
_VMEM_TILE_BUDGET = 40 * 1024 * 1024   # double-buffered tiles + acc; v7x-safe
_VMEM_LIMIT_BYTES = 48 * 1024 * 1024   # explicit scoped-VMEM limit (all gens)


@functools.partial(jax.jit, static_argnames=("tm", "tn", "tk"))
def replicated_linear(x, weight, bias=None, *, tm=512, tn=512, tk=None):
    """y = x @ weight.T + bias, matching torch.nn.functional.linear.

    x: (..., K), weight: (N, K), bias: (N,) or None.
    """
    orig_shape = x.shape
    k = orig_shape[-1]
    n = weight.shape[0]
    assert weight.shape[1] == k, "weight must be (output_size, input_size)"

    x2d = x.reshape(-1, k)
    m = x2d.shape[0]

    in_b = jnp.dtype(x.dtype).itemsize
    w_b = jnp.dtype(weight.dtype).itemsize
    out_b = in_b

    if tk is None:
        tk = 2048 if max(in_b, w_b) <= 2 else 1024

    decode = m <= 32                      # decode-shaped: pure weight streaming
    w_bufs = 3 if decode else 2

    # Clamp requested tiles into the VMEM budget (defaults use ~12 MiB; this
    # only matters for oversized user-supplied tiles).
    def _footprint(tm_, tn_, tk_):
        return (2 * tm_ * tk_ * in_b          # x tile, double-buffered
                + w_bufs * tn_ * tk_ * w_b    # W tile
                + 2 * tm_ * tn_ * out_b       # output tile
                + tm_ * tn_ * 4               # f32 accumulator
                + 2 * tn_ * 4)                # bias tile

    while _footprint(tm, tn, tk) > _VMEM_TILE_BUDGET:
        if tk > 512:
            tk //= 2
        elif tm > 128:
            tm //= 2
        elif tn > 256:
            tn //= 2
        else:
            break

    # --- M tiling: spread rows evenly over ceil(m/tm) tiles (8-aligned), so
    #     the wrapper pads at most 7 rows instead of up to tm-1.
    grid_m = max(1, _cdiv(m, tm))
    tm_eff = _round_up(_cdiv(m, grid_m), 8)
    mp = tm_eff * grid_m

    # --- N tiling: 256-aligned to fill the 256x256 MXU on v6e/v7x (128 only
    #     when N itself is tiny). If the M grid is singleton, split N into >=2
    #     blocks (when it adds no extra padding) so both v7x cores get work.
    lane = 128 if n <= 128 else 256
    grid_n = max(1, _cdiv(n, tn))
    tn_eff = _round_up(_cdiv(n, grid_n), lane)
    if grid_m == 1 and grid_n == 1 and n > lane:
        tn_split = _round_up(_cdiv(n, 2), lane)
        if 2 * tn_split <= tn_eff:        # never increases padded N
            grid_n, tn_eff = 2, tn_split
    np_ = tn_eff * grid_n

    # --- K tiling (reduction axis, 128-aligned). K zero-padding is required
    #     for correctness: padded K elements must contribute exactly 0.
    grid_k = max(1, _cdiv(k, tk))
    tk_eff = _round_up(_cdiv(k, grid_k), 128)
    kp = tk_eff * grid_k

    # --- Pad only when needed (aligned shapes pass through untouched).
    x_p = x2d if (mp == m and kp == k) else jnp.pad(x2d, ((0, mp - m), (0, kp - k)))
    # TODO(synk): in a real model, pre-pad / pre-lay-out the static weight once
    # at load time instead of per forward call (this pad is skipped entirely
    # for 128-aligned N/K, the common LLM case).
    w_p = weight if (np_ == n and kp == k) else jnp.pad(
        weight, ((0, np_ - n), (0, kp - k)))

    grid = (grid_m, grid_n, grid_k)

    x_spec = pl.BlockSpec((tm_eff, tk_eff), lambda i, j, kk: (i, kk))
    if decode and grid_n * grid_k >= 3:
        # Weight streaming dominates for tiny M: deepen the W pipeline.
        w_spec = pl.BlockSpec((tn_eff, tk_eff), lambda i, j, kk: (j, kk),
                              pipeline_mode=pl.Buffered(3))
    else:
        w_spec = pl.BlockSpec((tn_eff, tk_eff), lambda i, j, kk: (j, kk))
    o_spec = pl.BlockSpec((tm_eff, tn_eff), lambda i, j, kk: (i, j))
    scratch = [pltpu.VMEM((tm_eff, tn_eff), jnp.float32)]

    cparams = pltpu.CompilerParams(
        dimension_semantics=("parallel", "parallel", "arbitrary"),
        vmem_limit_bytes=_VMEM_LIMIT_BYTES,
    )

    bytes_accessed = (mp * kp * in_b) + (np_ * kp * w_b) + (mp * np_ * out_b)
    if bias is not None:
        bytes_accessed += np_ * jnp.dtype(bias.dtype).itemsize
    cost = pl.CostEstimate(flops=2 * mp * np_ * kp,
                           transcendentals=0,
                           bytes_accessed=bytes_accessed)

    out_shape = jax.ShapeDtypeStruct((mp, np_), x.dtype)

    if bias is None:
        out_p = pl.pallas_call(
            _matmul_kernel,
            out_shape=out_shape,
            grid_spec=pltpu.PrefetchScalarGridSpec(
                num_scalar_prefetch=0,
                grid=grid,
                in_specs=[x_spec, w_spec],
                out_specs=o_spec,
                scratch_shapes=scratch,
            ),
            compiler_params=cparams,
            cost_estimate=cost,
        )(x_p, w_p)
    else:
        b2d = bias.reshape(1, n)
        b_p = b2d if np_ == n else jnp.pad(b2d, ((0, 0), (0, np_ - n)))
        b_spec = pl.BlockSpec((1, tn_eff), lambda i, j, kk: (0, j))
        out_p = pl.pallas_call(
            _matmul_bias_kernel,
            out_shape=out_shape,
            grid_spec=pltpu.PrefetchScalarGridSpec(
                num_scalar_prefetch=0,
                grid=grid,
                in_specs=[x_spec, w_spec, b_spec],
                out_specs=o_spec,
                scratch_shapes=scratch,
            ),
            compiler_params=cparams,
            cost_estimate=cost,
        )(x_p, w_p, b_p)

    out = out_p if (mp == m and np_ == n) else out_p[:m, :n]
    return out.reshape(*orig_shape[:-1], n)


if __name__ == "__main__":
    key = jax.random.PRNGKey(0)

    # --- 1) small case implied by the module: batch=2, seq=8, in=32, out=48
    batch, seq, input_size, output_size = 2, 8, 32, 48
    kx, kw, kb = jax.random.split(key, 3)
    x = jax.random.normal(kx, (batch, seq, input_size), dtype=jnp.float32)
    weight = jax.random.normal(kw, (output_size, input_size), dtype=jnp.float32) * 0.05
    bias = jax.random.normal(kb, (output_size,), dtype=jnp.float32) * 0.05

    y = jax.block_until_ready(replicated_linear(x, weight, bias))
    y_ref = x @ weight.T + bias
    assert y.shape == (batch, seq, output_size)
    assert jnp.allclose(y, y_ref, atol=1e-5, rtol=1e-5), "mismatch vs reference (bias)"

    # bias=None path (ReplicatedLinear default).
    y_nb = jax.block_until_ready(replicated_linear(x, weight, None))
    assert jnp.allclose(y_nb, x @ weight.T, atol=1e-5, rtol=1e-5), "mismatch (no bias)"

    # --- 2) non-divisible shapes: exercises the minimal-padding path.
    k2x, k2w, k2b = jax.random.split(jax.random.PRNGKey(1), 3)
    x2 = jax.random.normal(k2x, (3, 7, 96), dtype=jnp.float32)
    w2 = jax.random.normal(k2w, (200, 96), dtype=jnp.float32) * 0.05
    b2 = jax.random.normal(k2b, (200,), dtype=jnp.float32) * 0.05
    y2 = jax.block_until_ready(replicated_linear(x2, w2, b2))
    y2_ref = x2 @ w2.T + b2
    assert y2.shape == (3, 7, 200)
    assert jnp.allclose(y2, y2_ref, atol=1e-4, rtol=1e-4), "mismatch (padded case)"

    # --- 3) multi-K-step accumulation (small tk forces grid_k=2).
    k3x, k3w = jax.random.split(jax.random.PRNGKey(2), 2)
    x3 = jax.random.normal(k3x, (4, 16, 256), dtype=jnp.float32)
    w3 = jax.random.normal(k3w, (128, 256), dtype=jnp.float32) * 0.05
    y3 = jax.block_until_ready(replicated_linear(x3, w3, None, tk=128))
    assert jnp.allclose(y3, x3 @ w3.T, atol=1e-4, rtol=1e-4), "mismatch (multi-K)"

    # --- 4) decode-shaped call: tiny M, wide N -> Buffered(3) weight stream
    #        and forced >=2 N blocks for megacore.
    k4x, k4w = jax.random.split(jax.random.PRNGKey(3), 2)
    x4 = jax.random.normal(k4x, (1, 2, 256), dtype=jnp.float32)
    w4 = jax.random.normal(k4w, (2048, 256), dtype=jnp.float32) * 0.05
    y4 = jax.block_until_ready(replicated_linear(x4, w4, None))
    assert y4.shape == (1, 2, 2048)
    assert jnp.allclose(y4, x4 @ w4.T, atol=1e-4, rtol=1e-4), "mismatch (decode)"

    print("KERNEL_OK")
</pallas_src>

<mosaic_0001>
module attributes {stable_mosaic.version = 11 : i64} {
  func.func @_matmul_bias_kernel(%arg0: i32, %arg1: i32, %arg2: i32, %arg3: memref<16x128xf32, #tpu.memory_space<vmem>>, %arg4: memref<128x128xf32, #tpu.memory_space<vmem>>, %arg5: memref<1x128xf32, #tpu.memory_space<vmem>>, %arg6: memref<16x128xf32, #tpu.memory_space<vmem>>, %arg7: memref<16x128xf32, #tpu.memory_space<vmem>>) attributes {dimension_semantics = [#tpu.dimension_semantics<parallel>, #tpu.dimension_semantics<parallel>, #tpu.dimension_semantics<arbitrary>], iteration_bounds = array<i64: 1, 1, 1>, scalar_prefetch = 0 : i64, scratch_operands = 1 : i64, tpu.core_type = #tpu.core_type<tc>, window_params = [{transform_indices = @transform_0, window_bounds = array<i64: 16, 128>}, {transform_indices = @transform_1, window_bounds = array<i64: 128, 128>}, {transform_indices = @transform_2, window_bounds = array<i64: 1, 128>}, {transform_indices = @transform_3, window_bounds = array<i64: 16, 128>}]} {
    %c0 = arith.constant 0 : index
    %c0_0 = arith.constant 0 : index
    %0 = vector.load %arg3[%c0, %c0_0] : memref<16x128xf32, #tpu.memory_space<vmem>>, vector<16x128xf32>
    %c0_1 = arith.constant 0 : index
    %c0_2 = arith.constant 0 : index
    %1 = vector.load %arg4[%c0_1, %c0_2] : memref<128x128xf32, #tpu.memory_space<vmem>>, vector<128x128xf32>
    %cst = arith.constant dense<0.000000e+00> : vector<16x128xf32>
    %2 = tpu.matmul %0, %1, %cst {dimension_numbers = #tpu.dot_dimension_numbers<[1], [1], [0], [0], [0, 0, 1, 0], [], []>} : vector<16x128xf32>, vector<128x128xf32>, vector<16x128xf32> -> vector<16x128xf32>
    %c0_i32 = arith.constant 0 : i32
    %3 = arith.cmpi eq, %arg2, %c0_i32 : i32
    %4 = arith.extui %3 : i1 to i32
    %c0_i32_3 = arith.constant 0 : i32
    %5 = arith.cmpi ne, %4, %c0_i32_3 : i32
    scf.if %5 {
      %c0_8 = arith.constant 0 : index
      %c0_9 = arith.constant 0 : index
      %12 = vector.load %arg7[%c0_8, %c0_9] : memref<16x128xf32, #tpu.memory_space<vmem>>, vector<16x128xf32>
      tpu.vector_store %arg7[%c0_8, %c0_9], %2 {strides = array<i32>} : memref<16x128xf32, #tpu.memory_space<vmem>>, vector<16x128xf32>,
    } else {
    }
    %c0_i32_4 = arith.constant 0 : i32
    %6 = arith.cmpi ne, %arg2, %c0_i32_4 : i32
    %7 = arith.extui %6 : i1 to i32
    %c0_i32_5 = arith.constant 0 : i32
    %8 = arith.cmpi ne, %7, %c0_i32_5 : i32
    scf.if %8 {
      %c0_8 = arith.constant 0 : index
      %c0_9 = arith.constant 0 : index
      %12 = vector.load %arg7[%c0_8, %c0_9] : memref<16x128xf32, #tpu.memory_space<vmem>>, vector<16x128xf32>
      %13 = arith.addf %12, %2 : vector<16x128xf32>
      %c0_10 = arith.constant 0 : index
      %c0_11 = arith.constant 0 : index
      %14 = vector.load %arg7[%c0_10, %c0_11] : memref<16x128xf32, #tpu.memory_space<vmem>>, vector<16x128xf32>
      tpu.vector_store %arg7[%c0_10, %c0_11], %13 {strides = array<i32>} : memref<16x128xf32, #tpu.memory_space<vmem>>, vector<16x128xf32>,
    } else {
    }
    %c0_i32_6 = arith.constant 0 : i32
    %9 = arith.cmpi eq, %arg2, %c0_i32_6 : i32
    %10 = arith.extui %9 : i1 to i32
    %c0_i32_7 = arith.constant 0 : i32
    %11 = arith.cmpi ne, %10, %c0_i32_7 : i32
    scf.if %11 {
      %c0_8 = arith.constant 0 : index
      %c0_9 = arith.constant 0 : index
      %12 = vector.load %arg7[%c0_8, %c0_9] : memref<16x128xf32, #tpu.memory_space<vmem>>, vector<16x128xf32>
      %c0_10 = arith.constant 0 : index
      %c0_11 = arith.constant 0 : index
      %13 = vector.load %arg5[%c0_10, %c0_11] : memref<1x128xf32, #tpu.memory_space<vmem>>, vector<1x128xf32>
      %14 = vector.broadcast %13 : vector<1x128xf32> to vector<16x128xf32>
      %15 = arith.addf %12, %14 : vector<16x128xf32>
      %c0_12 = arith.constant 0 : index
      %c0_13 = arith.constant 0 : index
      %16 = vector.load %arg6[%c0_12, %c0_13] : memref<16x128xf32, #tpu.memory_space<vmem>>, vector<16x128xf32>
      tpu.vector_store %arg6[%c0_12, %c0_13], %15 {strides = array<i32>} : memref<16x128xf32, #tpu.memory_space<vmem>>, vector<16x128xf32>,
    } else {
    }
    return
  }
  func.func @transform_0(%arg0: i32, %arg1: i32, %arg2: i32) -> (i32, i32) {
    %c0_i32 = arith.constant 0 : i32
    return %arg0, %arg2 : i32, i32
  }
  func.func @transform_1(%arg0: i32, %arg1: i32, %arg2: i32) -> (i32, i32) {
    %c0_i32 = arith.constant 0 : i32
    return %arg1, %arg2 : i32, i32
  }
  func.func @transform_2(%arg0: i32, %arg1: i32, %arg2: i32) -> (i32, i32) {
    %c0_i32 = arith.constant 0 : i32
    %c0_i32_0 = arith.constant 0 : i32
    return %c0_i32, %arg1 : i32, i32
  }
  func.func @transform_3(%arg0: i32, %arg1: i32, %arg2: i32) -> (i32, i32) {
    %c0_i32 = arith.constant 0 : i32
    return %arg0, %arg1 : i32, i32
  }
}

</mosaic_0001>

<llo_original>
// kernel: replicated_linear.1
$region0: #{replicated_linear.1}
  #allocation0 [shape = 'u32[]', space=smem, size = 0x4, offset = 0x4, fixed_abs, tag = 'smem constant byte address 0x4 - core index']
  #allocation1 [shape = 'u32[144,128]{1,0:T(1,128)}', space=vmem, size = 0x12000, scoped, tag = 'internal scratch']
  #allocation2 [shape = 'f32[16,128]{1,0:T(8,128)}', space=vmem, size = 0x2000, scoped, tag = 'scratch operand']
  %s0 = inlined_call_operand.vmem [shape: f32[16,128], index: 0, kind: input, shape index: {}]
  %s1 = inlined_call_operand.vmem [shape: f32[128,128], index: 1, kind: input, shape index: {}]
  %s2 = inlined_call_operand.vmem [shape: f32[1,128], index: 2, kind: input, shape index: {}]
  %s3 = inlined_call_operand.vmem [shape: f32[16,128], index: 3, kind: output, shape index: {}]
  %s4 = sld [smem:[#allocation0]]
  $region34: #{replicated_linear.1} parent=0
    _
  %s6 = ssub.s32 1, %s4
  %s7 = scalar_select 0, %s6, %s4
  // Predicated region
  $region2: #{replicated_linear.1} parent=0 // pred_check
    _
  $region3: #{replicated_linear.1} parent=0 // pred_check_branch
    %9 = sbr.rel (0) target = $region5
  $region4: #{replicated_linear.1} parent=0 // pred_region
    _
  $region5: #{replicated_linear.1} parent=0 // pred_fallthru
    _
  // Predicated region
  $region6: #{replicated_linear.1} parent=0 // pred_check
    _
  $region7: #{replicated_linear.1} parent=0 // pred_check_branch
    %11 = sbr.rel (0) target = $region9
  $region8: #{replicated_linear.1} parent=0 // pred_region
    _
  $region9: #{replicated_linear.1} parent=0 // pred_fallthru
    _
  // Predicated region
  $region10: #{replicated_linear.1} parent=0 // pred_check
    _
  $region11: #{replicated_linear.1} parent=0 // pred_check_branch
    %13 = sbr.rel (0) target = $region13
  $region12: #{replicated_linear.1} parent=0 // pred_region
    _
  $region13: #{replicated_linear.1} parent=0 // pred_fallthru
    _
  %v14 = vld [vmem:[%s0] sm:$0xff]
  %v15 = vld [vmem:[%s0 + $0x8] sm:$0xff]
  %v16 = vld [vmem:[%s1] sm:$0xff]
  %v17 = vld [vmem:[%s1 + $0x8] sm:$0xff]
  %v18 = vld [vmem:[%s1 + $0x10] sm:$0xff]
  %v19 = vld [vmem:[%s1 + $0x18] sm:$0xff]
  %v20 = vld [vmem:[%s1 + $0x20] sm:$0xff]
  %v21 = vld [vmem:[%s1 + $0x28] sm:$0xff]
  %v22 = vld [vmem:[%s1 + $0x30] sm:$0xff]
  %v23 = vld [vmem:[%s1 + $0x38] sm:$0xff]
  %v24 = vld [vmem:[%s1 + $0x40] sm:$0xff]
  %v25 = vld [vmem:[%s1 + $0x48] sm:$0xff]
  %v26 = vld [vmem:[%s1 + $0x50] sm:$0xff]
  %v27 = vld [vmem:[%s1 + $0x58] sm:$0xff]
  %v28 = vld [vmem:[%s1 + $0x60] sm:$0xff]
  %v29 = vld [vmem:[%s1 + $0x68] sm:$0xff]
  %v30 = vld [vmem:[%s1 + $0x70] sm:$0xff]
  %v31 = vld [vmem:[%s1 + $0x78] sm:$0xff]
  %32 = vmatprep.subr.mxu0 0.0
  %33 = vmatpush1.xpose.msra.mxu0 %v16
  %34 = vmatprep.subr.mxu0 0.0
  %35 = vmatpush1.xpose.msra.mxu0 %v17
  %36 = vmatprep.subr.mxu0 0.0
  %37 = vmatpush1.xpose.msra.mxu0 %v18
  %38 = vmatprep.subr.mxu0 0.0
  %39 = vmatpush1.xpose.msra.mxu0 %v19
  %40 = vmatprep.subr.mxu0 0.0
  %41 = vmatpush1.xpose.msra.mxu0 %v20
  %42 = vmatprep.subr.mxu0 0.0
  %43 = vmatpush1.xpose.msra.mxu0 %v21
  %44 = vmatprep.subr.mxu0 0.0
  %45 = vmatpush1.xpose.msra.mxu0 %v22
  %46 = vmatprep.subr.mxu0 0.0
  %47 = vmatpush1.xpose.msra.mxu0 %v23
  %48 = vmatprep.subr.mxu0 0.0
  %49 = vmatpush1.xpose.msra.mxu0 %v24
  %50 = vmatprep.subr.mxu0 0.0
  %51 = vmatpush1.xpose.msra.mxu0 %v25
  %52 = vmatprep.subr.mxu0 0.0
  %53 = vmatpush1.xpose.msra.mxu0 %v26
  %54 = vmatprep.subr.mxu0 0.0
  %55 = vmatpush1.xpose.msra.mxu0 %v27
  %56 = vmatprep.subr.mxu0 0.0
  %57 = vmatpush1.xpose.msra.mxu0 %v28
  %58 = vmatprep.subr.mxu0 0.0
  %59 = vmatpush1.xpose.msra.mxu0 %v29
  %60 = vmatprep.subr.mxu0 0.0
  %61 = vmatpush1.xpose.msra.mxu0 %v30
  %62 = vmatprep.subr.mxu0 0.0
  %63 = vmatpush1.xpose.msra.mxu0 %v31
  %64 = vmatprep.subr.mxu0 0.0
  %65 = vmatpush1.xpose.msra.mxu0 0.0
  %66 = vmatprep.subr.mxu0 0.0
  %67 = vmatpush1.xpose.msra.mxu0 0.0
  %68 = vmatprep.subr.mxu0 0.0
  %69 = vmatpush1.xpose.msra.mxu0 0.0
  %70 = vmatprep.subr.mxu0 0.0
  %71 = vmatpush1.xpose.msra.mxu0 0.0
  %72 = vmatprep.subr.mxu0 0.0
  %73 = vmatpush1.xpose.msra.mxu0 0.0
  %74 = vmatprep.subr.mxu0 0.0
  %75 = vmatpush1.xpose.msra.mxu0 0.0
  %76 = vmatprep.subr.mxu0 0.0
  %77 = vmatpush1.xpose.msra.mxu0 0.0
  %78 = vmatprep.subr.mxu0 0.0
  %79 = vmatpush1.xpose.msra.mxu0 0.0
  %80 = vmatprep.subr.mxu0 0.0
  %81 = vmatpush1.xpose.msra.mxu0 0.0
  %82 = vmatprep.subr.mxu0 0.0
  %83 = vmatpush1.xpose.msra.mxu0 0.0
  %84 = vmatprep.subr.mxu0 0.0
  %85 = vmatpush1.xpose.msra.mxu0 0.0
  %86 = vmatprep.subr.mxu0 0.0
  %87 = vmatpush1.xpose.msra.mxu0 0.0
  %88 = vmatprep.subr.mxu0 0.0
  %89 = vmatpush1.xpose.msra.mxu0 0.0
  %90 = vmatprep.subr.mxu0 0.0
  %91 = vmatpush1.xpose.msra.mxu0 0.0
  %92 = vmatprep.subr.mxu0 0.0
  %93 = vmatpush1.xpose.msra.mxu0 0.0
  %94 = vmatprep.subr.mxu0 0.0
  %95 = vmatpush1.xpose.msra.mxu0 0.0
  %96 = vmatprep.mubr.f32.mxu0 0.0
  %97 = vmatmul.mubr.f32.gmra.mrb[0].mxu0 %v14
  %v98 = vpop.f32.mrb[0].mxu0
  %v99 = vadd.f32 0.0, %v98
  %v100 = vpop.f32.mrb[0].mxu0
  %101 = vmatprep.mubr.f32.mxu0 0.0
  %102 = vmatmul.mubr.f32.gmra.mrb[0].mxu0 %v15
  %v103 = vpop.f32.mrb[0].mxu0
  %v104 = vadd.f32 0.0, %v103
  %v105 = vpop.f32.mrb[0].mxu0
  %106 = vdwg.mxu0
  %p107 = scmp.eq.s32.totalorder 0, 0
  // Predicated region
  $region14: #{replicated_linear.1} parent=0 // pred_check
    %p108 = pneg %p107
  $region15: #{replicated_linear.1} parent=0 // pred_check_branch
    %110 = sbr.rel (%p108) target = $region17
  $region16: #{replicated_linear.1} parent=0 // pred_region
    %111 = vst [vmem:[#allocation2] sm:$0xff] %v99
    %112 = vst [vmem:[#allocation2 + $0x8] sm:$0xff] %v104
  $region17: #{replicated_linear.1} parent=0 // pred_fallthru
    _
  %p113 = scmp.ne.s32.totalorder 0, 0
  // Predicated region
  $region18: #{replicated_linear.1} parent=0 // pred_check
    %p114 = pneg %p113
  $region19: #{replicated_linear.1} parent=0 // pred_check_branch
    %116 = sbr.rel (%p114) target = $region21
  $region20: #{replicated_linear.1} parent=0 // pred_region
    %v117 = vld [vmem:[#allocation2] sm:$0xff]
    %v118 = vld [vmem:[#allocation2 + $0x8] sm:$0xff]
    %v119 = vadd.f32 %v117, %v99
    %v120 = vadd.f32 %v118, %v104
    %121 = vst [vmem:[#allocation2] sm:$0xff] %v119
    %122 = vst [vmem:[#allocation2 + $0x8] sm:$0xff] %v120
  $region21: #{replicated_linear.1} parent=0 // pred_fallthru
    _
  // Predicated region
  $region22: #{replicated_linear.1} parent=0 // pred_check
    %p123 = pneg %p107
  $region23: #{replicated_linear.1} parent=0 // pred_check_branch
    %125 = sbr.rel (%p123) target = $region25
  $region24: #{replicated_linear.1} parent=0 // pred_region
    %v126 = vld [vmem:[#allocation2] sm:$0xff]
    %v127 = vld [vmem:[#allocation2 + $0x8] sm:$0xff]
    %v128 = vld [vmem:[%s2] sm:$0x1]
    %v130 = vlaneseq
    %v131 = vshrl.u32 %v130, 7
    %v132 = vsub.s32 0, %v131
    %v133 = vrot.slane %v128, %v132
    %v135 = vadd.f32 %v126, %v133
    %v136 = vadd.f32 %v127, %v133
    %137 = vst [vmem:[%s3] sm:$0xff] %v135
    %138 = vst [vmem:[%s3 + $0x8] sm:$0xff] %v136
  $region25: #{replicated_linear.1} parent=0 // pred_fallthru
    _
  // Predicated region
  $region26: #{replicated_linear.1} parent=0 // pred_check
    _
  $region27: #{replicated_linear.1} parent=0 // pred_check_branch
    %140 = sbr.rel (0) target = $region29
  $region28: #{replicated_linear.1} parent=0 // pred_region
    _
  $region29: #{replicated_linear.1} parent=0 // pred_fallthru
    _
  // Predicated region
  $region30: #{replicated_linear.1} parent=0 // pred_check
    _
  $region31: #{replicated_linear.1} parent=0 // pred_check_branch
    %142 = sbr.rel (0) target = $region33
  $region32: #{replicated_linear.1} parent=0 // pred_region
    _
  $region33: #{replicated_linear.1} parent=0 // pred_fallthru
    _

</llo_original>
